<compile_context>
chip_gen: v7x
topology: tpu7x:2x2x1
jax: 0.10.0
libtpu: 0.0.40
codegen_flags: <defaults>
</compile_context>

<pallas_src>
import jax
import jax.numpy as jnp
from jax.experimental import pallas as pl
from jax.experimental.pallas import tpu as pltpu

IN_DIM = 8 * 8 * 3    # 192
H1 = 256
H2 = 512
OUT_DIM = 8 * 8 * 3   # 192


def _round_up(x, m):
    return ((x + m - 1) // m) * m


def _cdiv(a, b):
    return (a + b - 1) // b


def _generator_kernel(x_ref, w1_ref, b1_ref, w2_ref, b2_ref, w3_ref, b3_ref,
                      o_ref):
    # x_ref: (bm, 192) f32; weights bf16; biases f32.
    x = x_ref[...].astype(jnp.bfloat16)
    # Layer 1: Linear(192 -> 256) + ReLU
    h1 = jnp.dot(x, w1_ref[...],
                 preferred_element_type=jnp.float32) + b1_ref[...]
    h1 = jnp.maximum(h1, 0.0).astype(jnp.bfloat16)
    # Layer 2: Linear(256 -> 512) + ReLU
    h2 = jnp.dot(h1, w2_ref[...],
                 preferred_element_type=jnp.float32) + b2_ref[...]
    h2 = jnp.maximum(h2, 0.0).astype(jnp.bfloat16)
    # Layer 3: Linear(512 -> 192) + Tanh (tanh uses the EUP slot; ~free)
    h3 = jnp.dot(h2, w3_ref[...],
                 preferred_element_type=jnp.float32) + b3_ref[...]
    o_ref[...] = jnp.tanh(h3).astype(o_ref.dtype)


def prepare_params(params):
    """One-time weight/bias preparation (call once, reuse across forwards)."""
    return {
        "w1": params["w1"].astype(jnp.bfloat16),   # (192, 256)
        "b1": params["b1"].astype(jnp.float32),    # (1, 256)
        "w2": params["w2"].astype(jnp.bfloat16),   # (256, 512)
        "b2": params["b2"].astype(jnp.float32),    # (1, 512)
        "w3": params["w3"].astype(jnp.bfloat16),   # (512, 192)
        "b3": params["b3"].astype(jnp.float32),    # (1, 192)
    }


def _choose_batch_tiling(B, batch_tile):
    """Balanced batch tiling: >=2 tiles whenever B > 8 (megacore on v7x),
    tile sizes balanced so B just over a boundary isn't rounded way up."""
    if B <= 8:
        n_tiles = 1
    else:
        n_tiles = max(2, _cdiv(B, batch_tile))
    bm = _round_up(_cdiv(B, n_tiles), 8)
    bm = min(bm, _round_up(B, 8))
    B_pad = _round_up(B, bm)
    return bm, B_pad


def generator_forward(x, params, *, batch_tile=512, out_dtype=jnp.float32):
    """x: (B, 192) float32.  params: output of prepare_params()."""
    B = x.shape[0]
    bm, B_pad = _choose_batch_tiling(B, batch_tile)

    # Row-pad only when B is not a multiple of the tile (zeros -> inert rows).
    if B_pad != B:
        x_in = jnp.pad(x, ((0, B_pad - B), (0, 0)))
    else:
        x_in = x

    w1 = params["w1"].astype(jnp.bfloat16)
    b1 = params["b1"].astype(jnp.float32)
    w2 = params["w2"].astype(jnp.bfloat16)
    b2 = params["b2"].astype(jnp.float32)
    w3 = params["w3"].astype(jnp.bfloat16)
    b3 = params["b3"].astype(jnp.float32)

    grid = (B_pad // bm,)

    # Weights/biases: constant index_map -> stay VMEM-resident (~0.65 MB bf16)
    # across all batch tiles.
    const = lambda shape: pl.BlockSpec(shape, lambda i: tuple(0 for _ in shape))

    out_p = pl.pallas_call(
        _generator_kernel,
        out_shape=jax.ShapeDtypeStruct((B_pad, OUT_DIM), out_dtype),
        grid_spec=pltpu.PrefetchScalarGridSpec(
            num_scalar_prefetch=0,
            grid=grid,
            in_specs=[
                pl.BlockSpec((bm, IN_DIM), lambda i: (i, 0)),   # x: batch-tiled
                const((IN_DIM, H1)), const((1, H1)),
                const((H1, H2)), const((1, H2)),
                const((H2, OUT_DIM)), const((1, OUT_DIM)),
            ],
            out_specs=pl.BlockSpec((bm, OUT_DIM), lambda i: (i, 0)),
        ),
        compiler_params=pltpu.CompilerParams(
            dimension_semantics=("parallel",),          # megacore on v7x
            vmem_limit_bytes=32 * 1024 * 1024),          # headroom for bm up to ~1024
    )(x_in, w1, b1, w2, b2, w3, b3)

    return out_p[:B] if B_pad != B else out_p


def init_params(key):
    """Deterministic init mimicking PyTorch nn.Linear default:
    U(-1/sqrt(fan_in), 1/sqrt(fan_in)).  Weights stored as (in, out)."""
    def linear(key, fan_in, fan_out):
        kw, kb = jax.random.split(key)
        bound = 1.0 / jnp.sqrt(fan_in)
        w = jax.random.uniform(kw, (fan_in, fan_out), jnp.float32,
                               -bound, bound)
        b = jax.random.uniform(kb, (1, fan_out), jnp.float32, -bound, bound)
        return w, b

    k1, k2, k3 = jax.random.split(key, 3)
    w1, b1 = linear(k1, IN_DIM, H1)
    w2, b2 = linear(k2, H1, H2)
    w3, b3 = linear(k3, H2, OUT_DIM)
    return {"w1": w1, "b1": b1, "w2": w2, "b2": b2, "w3": w3, "b3": b3}


def generator_ref_mixed(x, p):
    """Reference matching the kernel's precision (bf16 matmuls, f32 accum)."""
    xb = x.astype(jnp.bfloat16)
    h1 = jnp.dot(xb, p["w1"].astype(jnp.bfloat16),
                 preferred_element_type=jnp.float32) + p["b1"]
    h1 = jnp.maximum(h1, 0.0).astype(jnp.bfloat16)
    h2 = jnp.dot(h1, p["w2"].astype(jnp.bfloat16),
                 preferred_element_type=jnp.float32) + p["b2"]
    h2 = jnp.maximum(h2, 0.0).astype(jnp.bfloat16)
    h3 = jnp.dot(h2, p["w3"].astype(jnp.bfloat16),
                 preferred_element_type=jnp.float32) + p["b3"]
    return jnp.tanh(h3)


def generator_ref_f32(x, p):
    h1 = jnp.maximum(x @ p["w1"] + p["b1"], 0.0)
    h2 = jnp.maximum(h1 @ p["w2"] + p["b2"], 0.0)
    return jnp.tanh(h2 @ p["w3"] + p["b3"])


if __name__ == "__main__":
    key = jax.random.PRNGKey(0)
    k_params, k_x = jax.random.split(key)
    params = init_params(k_params)
    gparams = prepare_params(params)   # one-time bf16 weight prep

    fwd = jax.jit(generator_forward)

    # Small aligned batch (single tile).
    B = 8
    x = jax.random.normal(k_x, (B, IN_DIM), jnp.float32)
    out = jax.block_until_ready(fwd(x, gparams))
    assert out.shape == (B, OUT_DIM)

    ref_mixed = generator_ref_mixed(x, params)
    err_mixed = float(jnp.max(jnp.abs(out - ref_mixed)))
    assert err_mixed < 2e-3, f"max abs err vs mixed ref {err_mixed}"
    ref_f32 = generator_ref_f32(x, params)
    err_f32 = float(jnp.max(jnp.abs(out - ref_f32)))
    assert err_f32 < 5e-2, f"max abs err vs f32 ref {err_f32}"

    # Non-tile-aligned batch exercising balanced multi-tile path (grid >= 2).
    B2 = 20
    x2 = jax.random.normal(jax.random.PRNGKey(1), (B2, IN_DIM), jnp.float32)
    out2 = jax.block_until_ready(fwd(x2, gparams))
    assert out2.shape == (B2, OUT_DIM)
    err2 = float(jnp.max(jnp.abs(out2 - generator_ref_mixed(x2, params))))
    assert err2 < 2e-3, f"max abs err vs mixed ref (B=20) {err2}"

    print("KERNEL_OK")
</pallas_src>

<mosaic_0001>
module attributes {stable_mosaic.version = 11 : i64} {
  func.func @_generator_kernel(%arg0: i32, %arg1: memref<8x192xf32, #tpu.memory_space<vmem>>, %arg2: memref<192x256xbf16, #tpu.memory_space<vmem>>, %arg3: memref<1x256xf32, #tpu.memory_space<vmem>>, %arg4: memref<256x512xbf16, #tpu.memory_space<vmem>>, %arg5: memref<1x512xf32, #tpu.memory_space<vmem>>, %arg6: memref<512x192xbf16, #tpu.memory_space<vmem>>, %arg7: memref<1x192xf32, #tpu.memory_space<vmem>>, %arg8: memref<8x192xf32, #tpu.memory_space<vmem>>) attributes {dimension_semantics = [#tpu.dimension_semantics<parallel>], iteration_bounds = array<i64: 1>, scalar_prefetch = 0 : i64, scratch_operands = 0 : i64, tpu.core_type = #tpu.core_type<tc>, window_params = [{transform_indices = @transform_0, window_bounds = array<i64: 8, 192>}, {pipeline_mode = #tpu.pipeline_mode<synchronous>, transform_indices = @transform_1, window_bounds = array<i64: 192, 256>}, {pipeline_mode = #tpu.pipeline_mode<synchronous>, transform_indices = @transform_2, window_bounds = array<i64: 1, 256>}, {pipeline_mode = #tpu.pipeline_mode<synchronous>, transform_indices = @transform_3, window_bounds = array<i64: 256, 512>}, {pipeline_mode = #tpu.pipeline_mode<synchronous>, transform_indices = @transform_4, window_bounds = array<i64: 1, 512>}, {pipeline_mode = #tpu.pipeline_mode<synchronous>, transform_indices = @transform_5, window_bounds = array<i64: 512, 192>}, {pipeline_mode = #tpu.pipeline_mode<synchronous>, transform_indices = @transform_6, window_bounds = array<i64: 1, 192>}, {transform_indices = @transform_7, window_bounds = array<i64: 8, 192>}]} {
    %c0 = arith.constant 0 : index
    %c0_0 = arith.constant 0 : index
    %0 = vector.load %arg1[%c0, %c0_0] : memref<8x192xf32, #tpu.memory_space<vmem>>, vector<8x192xf32>
    %1 = arith.truncf %0 : vector<8x192xf32> to vector<8x192xbf16>
    %c0_1 = arith.constant 0 : index
    %c0_2 = arith.constant 0 : index
    %2 = vector.load %arg2[%c0_1, %c0_2] : memref<192x256xbf16, #tpu.memory_space<vmem>>, vector<192x256xbf16>
    %cst = arith.constant dense<0.000000e+00> : vector<8x256xf32>
    %3 = tpu.matmul %1, %2, %cst {dimension_numbers = #tpu.dot_dimension_numbers<[1], [0], [0], [1], [0, 0, 1, 1], [], []>} : vector<8x192xbf16>, vector<192x256xbf16>, vector<8x256xf32> -> vector<8x256xf32>
    %c0_3 = arith.constant 0 : index
    %c0_4 = arith.constant 0 : index
    %4 = vector.load %arg3[%c0_3, %c0_4] : memref<1x256xf32, #tpu.memory_space<vmem>>, vector<1x256xf32>
    %5 = vector.broadcast %4 : vector<1x256xf32> to vector<8x256xf32>
    %6 = arith.addf %3, %5 : vector<8x256xf32>
    %cst_5 = arith.constant 0.000000e+00 : f32
    %7 = vector.broadcast %cst_5 : f32 to vector<8x256xf32>
    %8 = arith.maximumf %6, %7 : vector<8x256xf32>
    %9 = arith.truncf %8 : vector<8x256xf32> to vector<8x256xbf16>
    %c0_6 = arith.constant 0 : index
    %c0_7 = arith.constant 0 : index
    %10 = vector.load %arg4[%c0_6, %c0_7] : memref<256x512xbf16, #tpu.memory_space<vmem>>, vector<256x512xbf16>
    %cst_8 = arith.constant dense<0.000000e+00> : vector<8x512xf32>
    %11 = tpu.matmul %9, %10, %cst_8 {dimension_numbers = #tpu.dot_dimension_numbers<[1], [0], [0], [1], [0, 0, 1, 1], [], []>} : vector<8x256xbf16>, vector<256x512xbf16>, vector<8x512xf32> -> vector<8x512xf32>
    %c0_9 = arith.constant 0 : index
    %c0_10 = arith.constant 0 : index
    %12 = vector.load %arg5[%c0_9, %c0_10] : memref<1x512xf32, #tpu.memory_space<vmem>>, vector<1x512xf32>
    %13 = vector.broadcast %12 : vector<1x512xf32> to vector<8x512xf32>
    %14 = arith.addf %11, %13 : vector<8x512xf32>
    %cst_11 = arith.constant 0.000000e+00 : f32
    %15 = vector.broadcast %cst_11 : f32 to vector<8x512xf32>
    %16 = arith.maximumf %14, %15 : vector<8x512xf32>
    %17 = arith.truncf %16 : vector<8x512xf32> to vector<8x512xbf16>
    %c0_12 = arith.constant 0 : index
    %c0_13 = arith.constant 0 : index
    %18 = vector.load %arg6[%c0_12, %c0_13] : memref<512x192xbf16, #tpu.memory_space<vmem>>, vector<512x192xbf16>
    %cst_14 = arith.constant dense<0.000000e+00> : vector<8x192xf32>
    %19 = tpu.matmul %17, %18, %cst_14 {dimension_numbers = #tpu.dot_dimension_numbers<[1], [0], [0], [1], [0, 0, 1, 1], [], []>} : vector<8x512xbf16>, vector<512x192xbf16>, vector<8x192xf32> -> vector<8x192xf32>
    %c0_15 = arith.constant 0 : index
    %c0_16 = arith.constant 0 : index
    %20 = vector.load %arg7[%c0_15, %c0_16] : memref<1x192xf32, #tpu.memory_space<vmem>>, vector<1x192xf32>
    %21 = vector.broadcast %20 : vector<1x192xf32> to vector<8x192xf32>
    %22 = arith.addf %19, %21 : vector<8x192xf32>
    %23 = math.tanh %22 : vector<8x192xf32>
    %c0_17 = arith.constant 0 : index
    %c0_18 = arith.constant 0 : index
    %24 = vector.load %arg8[%c0_17, %c0_18] : memref<8x192xf32, #tpu.memory_space<vmem>>, vector<8x192xf32>
    tpu.vector_store %arg8[%c0_17, %c0_18], %23 {strides = array<i32>} : memref<8x192xf32, #tpu.memory_space<vmem>>, vector<8x192xf32>,
    return
  }
  func.func @transform_0(%arg0: i32) -> (i32, i32) {
    %c0_i32 = arith.constant 0 : i32
    %c0_i32_0 = arith.constant 0 : i32
    return %arg0, %c0_i32 : i32, i32
  }
  func.func @transform_1(%arg0: i32) -> (i32, i32) {
    %c0_i32 = arith.constant 0 : i32
    %c0_i32_0 = arith.constant 0 : i32
    %c0_i32_1 = arith.constant 0 : i32
    return %c0_i32, %c0_i32_0 : i32, i32
  }
  func.func @transform_2(%arg0: i32) -> (i32, i32) {
    %c0_i32 = arith.constant 0 : i32
    %c0_i32_0 = arith.constant 0 : i32
    %c0_i32_1 = arith.constant 0 : i32
    return %c0_i32, %c0_i32_0 : i32, i32
  }
  func.func @transform_3(%arg0: i32) -> (i32, i32) {
    %c0_i32 = arith.constant 0 : i32
    %c0_i32_0 = arith.constant 0 : i32
    %c0_i32_1 = arith.constant 0 : i32
    return %c0_i32, %c0_i32_0 : i32, i32
  }
  func.func @transform_4(%arg0: i32) -> (i32, i32) {
    %c0_i32 = arith.constant 0 : i32
    %c0_i32_0 = arith.constant 0 : i32
    %c0_i32_1 = arith.constant 0 : i32
    return %c0_i32, %c0_i32_0 : i32, i32
  }
  func.func @transform_5(%arg0: i32) -> (i32, i32) {
    %c0_i32 = arith.constant 0 : i32
    %c0_i32_0 = arith.constant 0 : i32
    %c0_i32_1 = arith.constant 0 : i32
    return %c0_i32, %c0_i32_0 : i32, i32
  }
  func.func @transform_6(%arg0: i32) -> (i32, i32) {
    %c0_i32 = arith.constant 0 : i32
    %c0_i32_0 = arith.constant 0 : i32
    %c0_i32_1 = arith.constant 0 : i32
    return %c0_i32, %c0_i32_0 : i32, i32
  }
  func.func @transform_7(%arg0: i32) -> (i32, i32) {
    %c0_i32 = arith.constant 0 : i32
    %c0_i32_0 = arith.constant 0 : i32
    return %arg0, %c0_i32 : i32, i32
  }
}

</mosaic_0001>

<llo_original>
// kernel: generator_forward.1
$region0: #{generator_forward.1}
  #allocation0 [shape = 'u32[]', space=smem, size = 0x4, offset = 0x4, fixed_abs, tag = 'smem constant byte address 0x4 - core index']
  #allocation1 [shape = 'u32[144,128]{1,0:T(1,128)}', space=vmem, size = 0x12000, scoped, tag = 'internal scratch']
  %s0 = inlined_call_operand.vmem [shape: f32[8,192], index: 0, kind: input, shape index: {}]
  %s1 = inlined_call_operand.vmem [shape: bf16[192,256], index: 1, kind: input, shape index: {}]
  %s2 = inlined_call_operand.vmem [shape: f32[1,256], index: 2, kind: input, shape index: {}]
  %s3 = inlined_call_operand.vmem [shape: bf16[256,512], index: 3, kind: input, shape index: {}]
  %s4 = inlined_call_operand.vmem [shape: f32[1,512], index: 4, kind: input, shape index: {}]
  %s5 = inlined_call_operand.vmem [shape: bf16[512,192], index: 5, kind: input, shape index: {}]
  %s6 = inlined_call_operand.vmem [shape: f32[1,192], index: 6, kind: input, shape index: {}]
  %s7 = inlined_call_operand.hbm [shape: f32[8,192], index: 7, kind: output, shape index: {}]
  %s8 = sld [smem:[#allocation0]]
  $region38: #{generator_forward.1} parent=0
    _
  %s10 = ssub.s32 1, %s8
  %s11 = scalar_select 0, %s10, %s8
  $region1: #{generator_forward.1} parent=0
    #allocation2 [shape = 'u8[8192]{0}', space=vmem, size = 0x2000, scoped, tag = 'output window, operand 0, single buffered']
    #allocation3 [shape = 's32[1]{0}', space=sflag, size = 0x4, scoped, tag = 'scoped memory for generator_forward.1']
    %12 = vsyncpa [#allocation3], 0
    // Predicated region
    $region2: #{generator_forward.1} parent=1 // pred_check
      _
    $region3: #{generator_forward.1} parent=1 // pred_check_branch
      %14 = sbr.rel (0) target = $region5
    $region4: #{generator_forward.1} parent=1 // pred_region
      _
    $region5: #{generator_forward.1} parent=1 // pred_fallthru
      _
    // Predicated region
    $region6: #{generator_forward.1} parent=1 // pred_check
      _
    $region7: #{generator_forward.1} parent=1 // pred_check_branch
      %16 = sbr.rel (0) target = $region9
    $region8: #{generator_forward.1} parent=1 // pred_region
      _
    $region9: #{generator_forward.1} parent=1 // pred_fallthru
      _
    // Predicated region
    $region10: #{generator_forward.1} parent=1 // pred_check
      _
    $region11: #{generator_forward.1} parent=1 // pred_check_branch
      %18 = sbr.rel (0) target = $region13
    $region12: #{generator_forward.1} parent=1 // pred_region
      _
    $region13: #{generator_forward.1} parent=1 // pred_fallthru
      _
    // Predicated region
    $region14: #{generator_forward.1} parent=1 // pred_check
      _
    $region15: #{generator_forward.1} parent=1 // pred_check_branch
      %20 = sbr.rel (0) target = $region17
    $region16: #{generator_forward.1} parent=1 // pred_region
      _
    $region17: #{generator_forward.1} parent=1 // pred_fallthru
      _
    // Predicated region
    $region18: #{generator_forward.1} parent=1 // pred_check
      _
    $region19: #{generator_forward.1} parent=1 // pred_check_branch
      %22 = sbr.rel (0) target = $region21
    $region20: #{generator_forward.1} parent=1 // pred_region
      _
    $region21: #{generator_forward.1} parent=1 // pred_fallthru
      _
    // Predicated region
    $region22: #{generator_forward.1} parent=1 // pred_check
      _
    $region23: #{generator_forward.1} parent=1 // pred_check_branch
      %24 = sbr.rel (0) target = $region25
    $region24: #{generator_forward.1} parent=1 // pred_region
      _
    $region25: #{generator_forward.1} parent=1 // pred_fallthru
      _
    // Predicated region
    $region26: #{generator_forward.1} parent=1 // pred_check
      _
    $region27: #{generator_forward.1} parent=1 // pred_check_branch
      %26 = sbr.rel (0) target = $region29
    $region28: #{generator_forward.1} parent=1 // pred_region
      _
    $region29: #{generator_forward.1} parent=1 // pred_fallthru
      _
    %v28 = vld [vmem:[%s0] sm:$0xff]
    %v29 = vld [vmem:[%s0 + $0x8] sm:$0xff]
    %v30 = vpack.c.bf16 %v28, %v28
    %v31 = vpack.c.bf16 %v29, %v29
    %v32 = vld [vmem:[%s1] sm:$0xff]
    %v33 = vld [vmem:[%s1 + $0x8] sm:$0xff]
    %v34 = vld [vmem:[%s1 + $0x10] sm:$0xff]
    %v35 = vld [vmem:[%s1 + $0x18] sm:$0xff]
    %v36 = vld [vmem:[%s1 + $0x20] sm:$0xff]
    %v37 = vld [vmem:[%s1 + $0x28] sm:$0xff]
    %v38 = vld [vmem:[%s1 + $0x30] sm:$0xff]
    %v39 = vld [vmem:[%s1 + $0x38] sm:$0xff]
    %v40 = vld [vmem:[%s1 + $0x40] sm:$0xff]
    %v41 = vld [vmem:[%s1 + $0x48] sm:$0xff]
    %v42 = vld [vmem:[%s1 + $0x50] sm:$0xff]
    %v43 = vld [vmem:[%s1 + $0x58] sm:$0xff]
    %v44 = vld [vmem:[%s1 + $0x60] sm:$0xff]
    %v45 = vld [vmem:[%s1 + $0x68] sm:$0xff]
    %v46 = vld [vmem:[%s1 + $0x70] sm:$0xff]
    %v47 = vld [vmem:[%s1 + $0x78] sm:$0xff]
    %v48 = vld [vmem:[%s1 + $0x80] sm:$0xff]
    %v49 = vld [vmem:[%s1 + $0x88] sm:$0xff]
    %v50 = vld [vmem:[%s1 + $0x90] sm:$0xff]
    %v51 = vld [vmem:[%s1 + $0x98] sm:$0xff]
    %v52 = vld [vmem:[%s1 + $0xa0] sm:$0xff]
    %v53 = vld [vmem:[%s1 + $0xa8] sm:$0xff]
    %v54 = vld [vmem:[%s1 + $0xb0] sm:$0xff]
    %v55 = vld [vmem:[%s1 + $0xb8] sm:$0xff]
    %v56 = vld [vmem:[%s2] sm:$0x3]
    %v58 = vlaneseq
    %v59 = vshrl.u32 %v58, 7
    %v60 = vsub.s32 0, %v59
    %v61 = vrot.slane %v56, %v60
    %v62 = vlaneseq
    %v63 = vshrl.u32 %v62, 7
    %v64 = vsub.s32 1, %v63
    %v65 = vrot.slane %v56, %v64
    %v92 = vunpack.c.l.b16 %v32
    %v93 = vunpack.c.h.b16 %v32
    %v94 = vunpack.c.l.b16 %v33
    %v95 = vunpack.c.h.b16 %v33
    %v96 = vunpack.c.l.b16 %v34
    %v97 = vunpack.c.h.b16 %v34
    %v98 = vunpack.c.l.b16 %v35
    %v99 = vunpack.c.h.b16 %v35
    %v100 = vunpack.c.l.b16 %v36
    %v101 = vunpack.c.h.b16 %v36
    %v102 = vunpack.c.l.b16 %v37
    %v103 = vunpack.c.h.b16 %v37
    %v104 = vunpack.c.l.b16 %v38
    %v105 = vunpack.c.h.b16 %v38
    %v106 = vunpack.c.l.b16 %v39
    %v107 = vunpack.c.h.b16 %v39
    %v108 = vunpack.c.l.b16 %v40
    %v109 = vunpack.c.h.b16 %v40
    %v110 = vunpack.c.l.b16 %v41
    %v111 = vunpack.c.h.b16 %v41
    %v112 = vunpack.c.l.b16 %v42
    %v113 = vunpack.c.h.b16 %v42
    %v114 = vunpack.c.l.b16 %v43
    %v115 = vunpack.c.h.b16 %v43
    %v116 = vunpack.c.l.b16 %v44
    %v117 = vunpack.c.h.b16 %v44
    %v118 = vunpack.c.l.b16 %v45
    %v119 = vunpack.c.h.b16 %v45
    %v120 = vunpack.c.l.b16 %v46
    %v121 = vunpack.c.h.b16 %v46
    %v122 = vunpack.c.l.b16 %v47
    %v123 = vunpack.c.h.b16 %v47
    %v124 = vunpack.c.l.b16 %v48
    %v125 = vunpack.c.h.b16 %v48
    %v126 = vunpack.c.l.b16 %v49
    %v127 = vunpack.c.h.b16 %v49
    %v128 = vunpack.c.l.b16 %v50
    %v129 = vunpack.c.h.b16 %v50
    %v130 = vunpack.c.l.b16 %v51
    %v131 = vunpack.c.h.b16 %v51
    %v132 = vunpack.c.l.b16 %v52
    %v133 = vunpack.c.h.b16 %v52
    %v134 = vunpack.c.l.b16 %v53
    %v135 = vunpack.c.h.b16 %v53
    %v136 = vunpack.c.l.b16 %v54
    %v137 = vunpack.c.h.b16 %v54
    %v138 = vunpack.c.l.b16 %v55
    %v139 = vunpack.c.h.b16 %v55
    %v140 = vpack.c.b16 %v94, %v92
    %v141 = vpack.c.b16 %v95, %v93
    %v142 = vpack.c.b16 %v98, %v96
    %v143 = vpack.c.b16 %v99, %v97
    %v144 = vpack.c.b16 %v102, %v100
    %v145 = vpack.c.b16 %v103, %v101
    %v146 = vpack.c.b16 %v106, %v104
    %v147 = vpack.c.b16 %v107, %v105
    %v148 = vpack.c.b16 %v110, %v108
    %v149 = vpack.c.b16 %v111, %v109
    %v150 = vpack.c.b16 %v114, %v112
    %v151 = vpack.c.b16 %v115, %v113
    %v152 = vpack.c.b16 %v118, %v116
    %v153 = vpack.c.b16 %v119, %v117
    %v154 = vpack.c.b16 %v122, %v120
    %v155 = vpack.c.b16 %v123, %v121
    %v156 = vpack.c.b16 %v126, %v124
    %v157 = vpack.c.b16 %v127, %v125
    %v158 = vpack.c.b16 %v130, %v128
    %v159 = vpack.c.b16 %v131, %v129
    %v160 = vpack.c.b16 %v134, %v132
    %v161 = vpack.c.b16 %v135, %v133
    %v162 = vpack.c.b16 %v138, %v136
    %v163 = vpack.c.b16 %v139, %v137
    %vm188 = vcmask 523264
    %v190 = vsel %vm188, %v31, 0
    %192 = vmatprep.subr.bf16.mxu0 %v141
    %193 = vmatpush1.bf16.msra.mxu0 %v140
    %194 = vmatprep.subr.bf16.mxu0 %v143
    %195 = vmatpush1.bf16.msra.mxu0 %v142
    %196 = vmatprep.subr.bf16.mxu0 %v145
    %197 = vmatpush1.bf16.msra.mxu0 %v144
    %198 = vmatprep.subr.bf16.mxu0 %v147
    %199 = vmatpush1.bf16.msra.mxu0 %v146
    %200 = vmatprep.subr.bf16.mxu0 %v149
    %201 = vmatpush1.bf16.msra.mxu0 %v148
    %202 = vmatprep.subr.bf16.mxu0 %v151
    %203 = vmatpush1.bf16.msra.mxu0 %v150
    %204 = vmatprep.subr.bf16.mxu0 %v153
    %205 = vmatpush1.bf16.msra.mxu0 %v152
    %206 = vmatprep.subr.bf16.mxu0 %v155
    %207 = vmatpush1.bf16.msra.mxu0 %v154
    %208 = vmatprep.subr.bf16.mxu0 %v157
    %209 = vmatpush1.bf16.msra.mxu0 %v156
    %210 = vmatprep.subr.bf16.mxu0 %v159
    %211 = vmatpush1.bf16.msra.mxu0 %v158
    %212 = vmatprep.subr.bf16.mxu0 %v161
    %213 = vmatpush1.bf16.msra.mxu0 %v160
    %214 = vmatprep.subr.bf16.mxu0 %v163
    %215 = vmatpush1.bf16.msra.mxu0 %v162
    %216 = vmatprep.subr.bf16.mxu0 0
    %217 = vmatpush1.bf16.msra.mxu0 0
    %218 = vmatprep.subr.bf16.mxu0 0
    %219 = vmatpush1.bf16.msra.mxu0 0
    %220 = vmatprep.subr.bf16.mxu0 0
    %221 = vmatpush1.bf16.msra.mxu0 0
    %222 = vmatprep.subr.bf16.mxu0 0
    %223 = vmatpush1.bf16.msra.mxu0 0
    %224 = vmatprep.mubr.bf16.mxu0 %v190
    %225 = vmatmul.mubr.bf16.gmra.mrb[0].mxu0 %v30
    %v226 = vpop.f32.mrb[0].mxu0
    %v227 = vadd.f32 %v61, %v226
    %v228 = vpop.f32.mrb[0].mxu0
    %v229 = vadd.f32 %v65, %v228
    %v230 = vpop.f32.mrb[0].mxu0
    %v231 = vpop.f32.mrb[0].mxu0
    %232 = vdwg.mxu0
    %v233 = vmax.f32 %v227, 0.0
    %v234 = vmax.f32 %v229, 0.0
    %v235 = vpack.c.bf16 %v233, %v233
    %v236 = vpack.c.bf16 %v234, %v234
    %v237 = vld [vmem:[%s3] sm:$0xff]
    %v238 = vld [vmem:[%s3 + $0x8] sm:$0xff]
    %v239 = vld [vmem:[%s3 + $0x10] sm:$0xff]
    %v240 = vld [vmem:[%s3 + $0x18] sm:$0xff]
    %v241 = vld [vmem:[%s3 + $0x20] sm:$0xff]
    %v242 = vld [vmem:[%s3 + $0x28] sm:$0xff]
    %v243 = vld [vmem:[%s3 + $0x30] sm:$0xff]
    %v244 = vld [vmem:[%s3 + $0x38] sm:$0xff]
    %v245 = vld [vmem:[%s3 + $0x40] sm:$0xff]
    %v246 = vld [vmem:[%s3 + $0x48] sm:$0xff]
    %v247 = vld [vmem:[%s3 + $0x50] sm:$0xff]
    %v248 = vld [vmem:[%s3 + $0x58] sm:$0xff]
    %v249 = vld [vmem:[%s3 + $0x60] sm:$0xff]
    %v250 = vld [vmem:[%s3 + $0x68] sm:$0xff]
    %v251 = vld [vmem:[%s3 + $0x70] sm:$0xff]
    %v252 = vld [vmem:[%s3 + $0x78] sm:$0xff]
    %v253 = vld [vmem:[%s3 + $0x80] sm:$0xff]
    %v254 = vld [vmem:[%s3 + $0x88] sm:$0xff]
    %v255 = vld [vmem:[%s3 + $0x90] sm:$0xff]
    %v256 = vld [vmem:[%s3 + $0x98] sm:$0xff]
    %v257 = vld [vmem:[%s3 + $0xa0] sm:$0xff]
    %v258 = vld [vmem:[%s3 + $0xa8] sm:$0xff]
    %v259 = vld [vmem:[%s3 + $0xb0] sm:$0xff]
    %v260 = vld [vmem:[%s3 + $0xb8] sm:$0xff]
    %v261 = vld [vmem:[%s3 + $0xc0] sm:$0xff]
    %v262 = vld [vmem:[%s3 + $0xc8] sm:$0xff]
    %v263 = vld [vmem:[%s3 + $0xd0] sm:$0xff]
    %v264 = vld [vmem:[%s3 + $0xd8] sm:$0xff]
    %v265 = vld [vmem:[%s3 + $0xe0] sm:$0xff]
    %v266 = vld [vmem:[%s3 + $0xe8] sm:$0xff]
    %v267 = vld [vmem:[%s3 + $0xf0] sm:$0xff]
    %v268 = vld [vmem:[%s3 + $0xf8] sm:$0xff]
    %v269 = vld [vmem:[%s3 + $0x100] sm:$0xff]
    %v270 = vld [vmem:[%s3 + $0x108] sm:$0xff]
    %v271 = vld [vmem:[%s3 + $0x110] sm:$0xff]
    %v272 = vld [vmem:[%s3 + $0x118] sm:$0xff]
    %v273 = vld [vmem:[%s3 + $0x120] sm:$0xff]
    %v274 = vld [vmem:[%s3 + $0x128] sm:$0xff]
    %v275 = vld [vmem:[%s3 + $0x130] sm:$0xff]
    %v276 = vld [vmem:[%s3 + $0x138] sm:$0xff]
    %v277 = vld [vmem:[%s3 + $0x140] sm:$0xff]
    %v278 = vld [vmem:[%s3 + $0x148] sm:$0xff]
    %v279 = vld [vmem:[%s3 + $0x150] sm:$0xff]
    %v280 = vld [vmem:[%s3 + $0x158] sm:$0xff]
    %v281 = vld [vmem:[%s3 + $0x160] sm:$0xff]
    %v282 = vld [vmem:[%s3 + $0x168] sm:$0xff]
    %v283 = vld [vmem:[%s3 + $0x170] sm:$0xff]
    %v284 = vld [vmem:[%s3 + $0x178] sm:$0xff]
    %v285 = vld [vmem:[%s3 + $0x180] sm:$0xff]
    %v286 = vld [vmem:[%s3 + $0x188] sm:$0xff]
    %v287 = vld [vmem:[%s3 + $0x190] sm:$0xff]
    %v288 = vld [vmem:[%s3 + $0x198] sm:$0xff]
    %v289 = vld [vmem:[%s3 + $0x1a0] sm:$0xff]
    %v290 = vld [vmem:[%s3 + $0x1a8] sm:$0xff]
    %v291 = vld [vmem:[%s3 + $0x1b0] sm:$0xff]
    %v292 = vld [vmem:[%s3 + $0x1b8] sm:$0xff]
    %v293 = vld [vmem:[%s3 + $0x1c0] sm:$0xff]
    %v294 = vld [vmem:[%s3 + $0x1c8] sm:$0xff]
    %v295 = vld [vmem:[%s3 + $0x1d0] sm:$0xff]
    %v296 = vld [vmem:[%s3 + $0x1d8] sm:$0xff]
    %v297 = vld [vmem:[%s3 + $0x1e0] sm:$0xff]
    %v298 = vld [vmem:[%s3 + $0x1e8] sm:$0xff]
    %v299 = vld [vmem:[%s3 + $0x1f0] sm:$0xff]
    %v300 = vld [vmem:[%s3 + $0x1f8] sm:$0xff]
    %v301 = vld [vmem:[%s4] sm:$0xf]
    %v303 = vlaneseq
    %v304 = vshrl.u32 %v303, 7
    %v305 = vsub.s32 0, %v304
    %v306 = vrot.slane %v301, %v305
    %v307 = vlaneseq
    %v308 = vshrl.u32 %v307, 7
    %v309 = vsub.s32 1, %v308
    %v310 = vrot.slane %v301, %v309
    %v311 = vlaneseq
    %v312 = vshrl.u32 %v311, 7
    %v313 = vsub.s32 2, %v312
    %v314 = vrot.slane %v301, %v313
    %v315 = vlaneseq
    %v316 = vshrl.u32 %v315, 7
    %v317 = vsub.s32 3, %v316
    %v318 = vrot.slane %v301, %v317
    %v387 = vunpack.c.l.b16 %v237
    %v388 = vunpack.c.h.b16 %v237
    %v389 = vunpack.c.l.b16 %v238
    %v390 = vunpack.c.h.b16 %v238
    %v391 = vunpack.c.l.b16 %v239
    %v392 = vunpack.c.h.b16 %v239
    %v393 = vunpack.c.l.b16 %v240
    %v394 = vunpack.c.h.b16 %v240
    %v395 = vunpack.c.l.b16 %v241
    %v396 = vunpack.c.h.b16 %v241
    %v397 = vunpack.c.l.b16 %v242
    %v398 = vunpack.c.h.b16 %v242
    %v399 = vunpack.c.l.b16 %v243
    %v400 = vunpack.c.h.b16 %v243
    %v401 = vunpack.c.l.b16 %v244
    %v402 = vunpack.c.h.b16 %v244
    %v403 = vunpack.c.l.b16 %v245
    %v404 = vunpack.c.h.b16 %v245
    %v405 = vunpack.c.l.b16 %v246
    %v406 = vunpack.c.h.b16 %v246
    %v407 = vunpack.c.l.b16 %v247
    %v408 = vunpack.c.h.b16 %v247
    %v409 = vunpack.c.l.b16 %v248
    %v410 = vunpack.c.h.b16 %v248
    %v411 = vunpack.c.l.b16 %v249
    %v412 = vunpack.c.h.b16 %v249
    %v413 = vunpack.c.l.b16 %v250
    %v414 = vunpack.c.h.b16 %v250
    %v415 = vunpack.c.l.b16 %v251
    %v416 = vunpack.c.h.b16 %v251
    %v417 = vunpack.c.l.b16 %v252
    %v418 = vunpack.c.h.b16 %v252
    %v419 = vunpack.c.l.b16 %v253
    %v420 = vunpack.c.h.b16 %v253
    %v421 = vunpack.c.l.b16 %v254
    %v422 = vunpack.c.h.b16 %v254
    %v423 = vunpack.c.l.b16 %v255
    %v424 = vunpack.c.h.b16 %v255
    %v425 = vunpack.c.l.b16 %v256
    %v426 = vunpack.c.h.b16 %v256
    %v427 = vunpack.c.l.b16 %v257
    %v428 = vunpack.c.h.b16 %v257
    %v429 = vunpack.c.l.b16 %v258
    %v430 = vunpack.c.h.b16 %v258
    %v431 = vunpack.c.l.b16 %v259
    %v432 = vunpack.c.h.b16 %v259
    %v433 = vunpack.c.l.b16 %v260
    %v434 = vunpack.c.h.b16 %v260
    %v435 = vunpack.c.l.b16 %v261
    %v436 = vunpack.c.h.b16 %v261
    %v437 = vunpack.c.l.b16 %v262
    %v438 = vunpack.c.h.b16 %v262
    %v439 = vunpack.c.l.b16 %v263
    %v440 = vunpack.c.h.b16 %v263
    %v441 = vunpack.c.l.b16 %v264
    %v442 = vunpack.c.h.b16 %v264
    %v443 = vunpack.c.l.b16 %v265
    %v444 = vunpack.c.h.b16 %v265
    %v445 = vunpack.c.l.b16 %v266
    %v446 = vunpack.c.h.b16 %v266
    %v447 = vunpack.c.l.b16 %v267
    %v448 = vunpack.c.h.b16 %v267
    %v449 = vunpack.c.l.b16 %v268
    %v450 = vunpack.c.h.b16 %v268
    %v451 = vunpack.c.l.b16 %v269
    %v452 = vunpack.c.h.b16 %v269
    %v453 = vunpack.c.l.b16 %v270
    %v454 = vunpack.c.h.b16 %v270
    %v455 = vunpack.c.l.b16 %v271
    %v456 = vunpack.c.h.b16 %v271
    %v457 = vunpack.c.l.b16 %v272
    %v458 = vunpack.c.h.b16 %v272
    %v459 = vunpack.c.l.b16 %v273
    %v460 = vunpack.c.h.b16 %v273
    %v461 = vunpack.c.l.b16 %v274
    %v462 = vunpack.c.h.b16 %v274
    %v463 = vunpack.c.l.b16 %v275
    %v464 = vunpack.c.h.b16 %v275
    %v465 = vunpack.c.l.b16 %v276
    %v466 = vunpack.c.h.b16 %v276
    %v467 = vunpack.c.l.b16 %v277
    %v468 = vunpack.c.h.b16 %v277
    %v469 = vunpack.c.l.b16 %v278
    %v470 = vunpack.c.h.b16 %v278
    %v471 = vunpack.c.l.b16 %v279
    %v472 = vunpack.c.h.b16 %v279
    %v473 = vunpack.c.l.b16 %v280
    %v474 = vunpack.c.h.b16 %v280
    %v475 = vunpack.c.l.b16 %v281
    %v476 = vunpack.c.h.b16 %v281
    %v477 = vunpack.c.l.b16 %v282
    %v478 = vunpack.c.h.b16 %v282
    %v479 = vunpack.c.l.b16 %v283
    %v480 = vunpack.c.h.b16 %v283
    %v481 = vunpack.c.l.b16 %v284
    %v482 = vunpack.c.h.b16 %v284
    %v483 = vunpack.c.l.b16 %v285
    %v484 = vunpack.c.h.b16 %v285
    %v485 = vunpack.c.l.b16 %v286
    %v486 = vunpack.c.h.b16 %v286
    %v487 = vunpack.c.l.b16 %v287
    %v488 = vunpack.c.h.b16 %v287
    %v489 = vunpack.c.l.b16 %v288
    %v490 = vunpack.c.h.b16 %v288
    %v491 = vunpack.c.l.b16 %v289
    %v492 = vunpack.c.h.b16 %v289
    %v493 = vunpack.c.l.b16 %v290
    %v494 = vunpack.c.h.b16 %v290
    %v495 = vunpack.c.l.b16 %v291
    %v496 = vunpack.c.h.b16 %v291
    %v497 = vunpack.c.l.b16 %v292
    %v498 = vunpack.c.h.b16 %v292
    %v499 = vunpack.c.l.b16 %v293
    %v500 = vunpack.c.h.b16 %v293
    %v501 = vunpack.c.l.b16 %v294
    %v502 = vunpack.c.h.b16 %v294
    %v503 = vunpack.c.l.b16 %v295
    %v504 = vunpack.c.h.b16 %v295
    %v505 = vunpack.c.l.b16 %v296
    %v506 = vunpack.c.h.b16 %v296
    %v507 = vunpack.c.l.b16 %v297
    %v508 = vunpack.c.h.b16 %v297
    %v509 = vunpack.c.l.b16 %v298
    %v510 = vunpack.c.h.b16 %v298
    %v511 = vunpack.c.l.b16 %v299
    %v512 = vunpack.c.h.b16 %v299
    %v513 = vunpack.c.l.b16 %v300
    %v514 = vunpack.c.h.b16 %v300
    %v515 = vpack.c.b16 %v391, %v387
    %v516 = vpack.c.b16 %v392, %v388
    %v517 = vpack.c.b16 %v393, %v389
    %v518 = vpack.c.b16 %v394, %v390
    %v519 = vpack.c.b16 %v399, %v395
    %v520 = vpack.c.b16 %v400, %v396
    %v521 = vpack.c.b16 %v401, %v397
    %v522 = vpack.c.b16 %v402, %v398
    %v523 = vpack.c.b16 %v407, %v403
    %v524 = vpack.c.b16 %v408, %v404
    %v525 = vpack.c.b16 %v409, %v405
    %v526 = vpack.c.b16 %v410, %v406
    %v527 = vpack.c.b16 %v415, %v411
    %v528 = vpack.c.b16 %v416, %v412
    %v529 = vpack.c.b16 %v417, %v413
    %v530 = vpack.c.b16 %v418, %v414
    %v531 = vpack.c.b16 %v423, %v419
    %v532 = vpack.c.b16 %v424, %v420
    %v533 = vpack.c.b16 %v425, %v421
    %v534 = vpack.c.b16 %v426, %v422
    %v535 = vpack.c.b16 %v431, %v427
    %v536 = vpack.c.b16 %v432, %v428
    %v537 = vpack.c.b16 %v433, %v429
    %v538 = vpack.c.b16 %v434, %v430
    %v539 = vpack.c.b16 %v439, %v435
    %v540 = vpack.c.b16 %v440, %v436
    %v541 = vpack.c.b16 %v441, %v437
    %v542 = vpack.c.b16 %v442, %v438
    %v543 = vpack.c.b16 %v447, %v443
    %v544 = vpack.c.b16 %v448, %v444
    %v545 = vpack.c.b16 %v449, %v445
    %v546 = vpack.c.b16 %v450, %v446
    %v547 = vpack.c.b16 %v455, %v451
    %v548 = vpack.c.b16 %v456, %v452
    %v549 = vpack.c.b16 %v457, %v453
    %v550 = vpack.c.b16 %v458, %v454
    %v551 = vpack.c.b16 %v463, %v459
    %v552 = vpack.c.b16 %v464, %v460
    %v553 = vpack.c.b16 %v465, %v461
    %v554 = vpack.c.b16 %v466, %v462
    %v555 = vpack.c.b16 %v471, %v467
    %v556 = vpack.c.b16 %v472, %v468
    %v557 = vpack.c.b16 %v473, %v469
    %v558 = vpack.c.b16 %v474, %v470
    %v559 = vpack.c.b16 %v479, %v475
    %v560 = vpack.c.b16 %v480, %v476
    %v561 = vpack.c.b16 %v481, %v477
    %v562 = vpack.c.b16 %v482, %v478
    %v563 = vpack.c.b16 %v487, %v483
    %v564 = vpack.c.b16 %v488, %v484
    %v565 = vpack.c.b16 %v489, %v485
    %v566 = vpack.c.b16 %v490, %v486
    %v567 = vpack.c.b16 %v495, %v491
    %v568 = vpack.c.b16 %v496, %v492
    %v569 = vpack.c.b16 %v497, %v493
    %v570 = vpack.c.b16 %v498, %v494
    %v571 = vpack.c.b16 %v503, %v499
    %v572 = vpack.c.b16 %v504, %v500
    %v573 = vpack.c.b16 %v505, %v501
    %v574 = vpack.c.b16 %v506, %v502
    %v575 = vpack.c.b16 %v511, %v507
    %v576 = vpack.c.b16 %v512, %v508
    %v577 = vpack.c.b16 %v513, %v509
    %v578 = vpack.c.b16 %v514, %v510
    %643 = vmatprep.subr.bf16.mxu0 %v516
    %644 = vmatpush1.bf16.msra.mxu0 %v515
    %645 = vmatprep.subr.bf16.mxu0 %v520
    %646 = vmatpush1.bf16.msra.mxu0 %v519
    %647 = vmatprep.subr.bf16.mxu0 %v524
    %648 = vmatpush1.bf16.msra.mxu0 %v523
    %649 = vmatprep.subr.bf16.mxu0 %v528
    %650 = vmatpush1.bf16.msra.mxu0 %v527
    %651 = vmatprep.subr.bf16.mxu0 %v532
    %652 = vmatpush1.bf16.msra.mxu0 %v531
    %653 = vmatprep.subr.bf16.mxu0 %v536
    %654 = vmatpush1.bf16.msra.mxu0 %v535
    %655 = vmatprep.subr.bf16.mxu0 %v540
    %656 = vmatpush1.bf16.msra.mxu0 %v539
    %657 = vmatprep.subr.bf16.mxu0 %v544
    %658 = vmatpush1.bf16.msra.mxu0 %v543
    %659 = vmatprep.subr.bf16.mxu0 %v548
    %660 = vmatpush1.bf16.msra.mxu0 %v547
    %661 = vmatprep.subr.bf16.mxu0 %v552
    %662 = vmatpush1.bf16.msra.mxu0 %v551
    %663 = vmatprep.subr.bf16.mxu0 %v556
    %664 = vmatpush1.bf16.msra.mxu0 %v555
    %665 = vmatprep.subr.bf16.mxu0 %v560
    %666 = vmatpush1.bf16.msra.mxu0 %v559
    %667 = vmatprep.subr.bf16.mxu0 %v564
    %668 = vmatpush1.bf16.msra.mxu0 %v563
    %669 = vmatprep.subr.bf16.mxu0 %v568
    %670 = vmatpush1.bf16.msra.mxu0 %v567
    %671 = vmatprep.subr.bf16.mxu0 %v572
    %672 = vmatpush1.bf16.msra.mxu0 %v571
    %673 = vmatprep.subr.bf16.mxu0 %v576
    %674 = vmatpush1.bf16.msra.mxu0 %v575
    %675 = vmatprep.mubr.bf16.mxu0 %v236
    %676 = vmatmul.mubr.bf16.gmra.mrb[0].mxu0 %v235
    %v677 = vpop.f32.mrb[0].mxu0
    %v678 = vadd.f32 %v306, %v677
    %v679 = vpop.f32.mrb[0].mxu0
    %v680 = vadd.f32 %v310, %v679
    %v681 = vpop.f32.mrb[0].mxu0
    %v682 = vpop.f32.mrb[0].mxu0
    %683 = vdwg.mxu0
    %684 = vmatprep.subr.bf16.mxu0 %v518
    %685 = vmatpush1.bf16.msra.mxu0 %v517
    %686 = vmatprep.subr.bf16.mxu0 %v522
    %687 = vmatpush1.bf16.msra.mxu0 %v521
    %688 = vmatprep.subr.bf16.mxu0 %v526
    %689 = vmatpush1.bf16.msra.mxu0 %v525
    %690 = vmatprep.subr.bf16.mxu0 %v530
    %691 = vmatpush1.bf16.msra.mxu0 %v529
    %692 = vmatprep.subr.bf16.mxu0 %v534
    %693 = vmatpush1.bf16.msra.mxu0 %v533
    %694 = vmatprep.subr.bf16.mxu0 %v538
    %695 = vmatpush1.bf16.msra.mxu0 %v537
    %696 = vmatprep.subr.bf16.mxu0 %v542
    %697 = vmatpush1.bf16.msra.mxu0 %v541
    %698 = vmatprep.subr.bf16.mxu0 %v546
    %699 = vmatpush1.bf16.msra.mxu0 %v545
    %700 = vmatprep.subr.bf16.mxu0 %v550
    %701 = vmatpush1.bf16.msra.mxu0 %v549
    %702 = vmatprep.subr.bf16.mxu0 %v554
    %703 = vmatpush1.bf16.msra.mxu0 %v553
    %704 = vmatprep.subr.bf16.mxu0 %v558
    %705 = vmatpush1.bf16.msra.mxu0 %v557
    %706 = vmatprep.subr.bf16.mxu0 %v562
    %707 = vmatpush1.bf16.msra.mxu0 %v561
    %708 = vmatprep.subr.bf16.mxu0 %v566
    %709 = vmatpush1.bf16.msra.mxu0 %v565
    %710 = vmatprep.subr.bf16.mxu0 %v570
    %711 = vmatpush1.bf16.msra.mxu0 %v569
    %712 = vmatprep.subr.bf16.mxu0 %v574
    %713 = vmatpush1.bf16.msra.mxu0 %v573
    %714 = vmatprep.subr.bf16.mxu0 %v578
    %715 = vmatpush1.bf16.msra.mxu0 %v577
    %716 = vmatprep.mubr.bf16.mxu0 %v236
    %717 = vmatmul.mubr.bf16.gmra.mrb[0].mxu0 %v235
    %v718 = vpop.f32.mrb[0].mxu0
    %v719 = vadd.f32 %v314, %v718
    %v720 = vpop.f32.mrb[0].mxu0
    %v721 = vadd.f32 %v318, %v720
    %v722 = vpop.f32.mrb[0].mxu0
    %v723 = vpop.f32.mrb[0].mxu0
    %724 = vdwg.mxu0
    %v725 = vmax.f32 %v678, 0.0
    %v726 = vmax.f32 %v680, 0.0
    %v727 = vmax.f32 %v719, 0.0
    %v728 = vmax.f32 %v721, 0.0
    %v729 = vpack.c.bf16 %v725, %v725
    %v730 = vpack.c.bf16 %v726, %v726
    %v731 = vpack.c.bf16 %v727, %v727
    %v732 = vpack.c.bf16 %v728, %v728
    %v733 = vld [vmem:[%s5] sm:$0xff]
    %v734 = vld [vmem:[%s5 + $0x8] sm:$0xff]
    %v735 = vld [vmem:[%s5 + $0x10] sm:$0xff]
    %v736 = vld [vmem:[%s5 + $0x18] sm:$0xff]
    %v737 = vld [vmem:[%s5 + $0x20] sm:$0xff]
    %v738 = vld [vmem:[%s5 + $0x28] sm:$0xff]
    %v739 = vld [vmem:[%s5 + $0x30] sm:$0xff]
    %v740 = vld [vmem:[%s5 + $0x38] sm:$0xff]
    %v741 = vld [vmem:[%s5 + $0x40] sm:$0xff]
    %v742 = vld [vmem:[%s5 + $0x48] sm:$0xff]
    %v743 = vld [vmem:[%s5 + $0x50] sm:$0xff]
    %v744 = vld [vmem:[%s5 + $0x58] sm:$0xff]
    %v745 = vld [vmem:[%s5 + $0x60] sm:$0xff]
    %v746 = vld [vmem:[%s5 + $0x68] sm:$0xff]
    %v747 = vld [vmem:[%s5 + $0x70] sm:$0xff]
    %v748 = vld [vmem:[%s5 + $0x78] sm:$0xff]
    %v749 = vld [vmem:[%s5 + $0x80] sm:$0xff]
    %v750 = vld [vmem:[%s5 + $0x88] sm:$0xff]
    %v751 = vld [vmem:[%s5 + $0x90] sm:$0xff]
    %v752 = vld [vmem:[%s5 + $0x98] sm:$0xff]
    %v753 = vld [vmem:[%s5 + $0xa0] sm:$0xff]
    %v754 = vld [vmem:[%s5 + $0xa8] sm:$0xff]
    %v755 = vld [vmem:[%s5 + $0xb0] sm:$0xff]
    %v756 = vld [vmem:[%s5 + $0xb8] sm:$0xff]
    %v757 = vld [vmem:[%s5 + $0xc0] sm:$0xff]
    %v758 = vld [vmem:[%s5 + $0xc8] sm:$0xff]
    %v759 = vld [vmem:[%s5 + $0xd0] sm:$0xff]
    %v760 = vld [vmem:[%s5 + $0xd8] sm:$0xff]
    %v761 = vld [vmem:[%s5 + $0xe0] sm:$0xff]
    %v762 = vld [vmem:[%s5 + $0xe8] sm:$0xff]
    %v763 = vld [vmem:[%s5 + $0xf0] sm:$0xff]
    %v764 = vld [vmem:[%s5 + $0xf8] sm:$0xff]
    %v765 = vld [vmem:[%s5 + $0x100] sm:$0xff]
    %v766 = vld [vmem:[%s5 + $0x108] sm:$0xff]
    %v767 = vld [vmem:[%s5 + $0x110] sm:$0xff]
    %v768 = vld [vmem:[%s5 + $0x118] sm:$0xff]
    %v769 = vld [vmem:[%s5 + $0x120] sm:$0xff]
    %v770 = vld [vmem:[%s5 + $0x128] sm:$0xff]
    %v771 = vld [vmem:[%s5 + $0x130] sm:$0xff]
    %v772 = vld [vmem:[%s5 + $0x138] sm:$0xff]
    %v773 = vld [vmem:[%s5 + $0x140] sm:$0xff]
    %v774 = vld [vmem:[%s5 + $0x148] sm:$0xff]
    %v775 = vld [vmem:[%s5 + $0x150] sm:$0xff]
    %v776 = vld [vmem:[%s5 + $0x158] sm:$0xff]
    %v777 = vld [vmem:[%s5 + $0x160] sm:$0xff]
    %v778 = vld [vmem:[%s5 + $0x168] sm:$0xff]
    %v779 = vld [vmem:[%s5 + $0x170] sm:$0xff]
    %v780 = vld [vmem:[%s5 + $0x178] sm:$0xff]
    %v781 = vld [vmem:[%s5 + $0x180] sm:$0xff]
    %v782 = vld [vmem:[%s5 + $0x188] sm:$0xff]
    %v783 = vld [vmem:[%s5 + $0x190] sm:$0xff]
    %v784 = vld [vmem:[%s5 + $0x198] sm:$0xff]
    %v785 = vld [vmem:[%s5 + $0x1a0] sm:$0xff]
    %v786 = vld [vmem:[%s5 + $0x1a8] sm:$0xff]
    %v787 = vld [vmem:[%s5 + $0x1b0] sm:$0xff]
    %v788 = vld [vmem:[%s5 + $0x1b8] sm:$0xff]
    %v789 = vld [vmem:[%s5 + $0x1c0] sm:$0xff]
    %v790 = vld [vmem:[%s5 + $0x1c8] sm:$0xff]
    %v791 = vld [vmem:[%s5 + $0x1d0] sm:$0xff]
    %v792 = vld [vmem:[%s5 + $0x1d8] sm:$0xff]
    %v793 = vld [vmem:[%s5 + $0x1e0] sm:$0xff]
    %v794 = vld [vmem:[%s5 + $0x1e8] sm:$0xff]
    %v795 = vld [vmem:[%s5 + $0x1f0] sm:$0xff]
    %v796 = vld [vmem:[%s5 + $0x1f8] sm:$0xff]
    %v797 = vld [vmem:[%s6] sm:$0x3]
    %v799 = vlaneseq
    %v800 = vshrl.u32 %v799, 7
    %v801 = vsub.s32 0, %v800
    %v802 = vrot.slane %v797, %v801
    %v803 = vlaneseq
    %v804 = vshrl.u32 %v803, 7
    %v805 = vsub.s32 1, %v804
    %v806 = vrot.slane %v797, %v805
    %v873 = vunpack.c.l.b16 %v733
    %v874 = vunpack.c.h.b16 %v733
    %v875 = vunpack.c.l.b16 %v734
    %v876 = vunpack.c.h.b16 %v734
    %v877 = vunpack.c.l.b16 %v735
    %v878 = vunpack.c.h.b16 %v735
    %v879 = vunpack.c.l.b16 %v736
    %v880 = vunpack.c.h.b16 %v736
    %v881 = vunpack.c.l.b16 %v737
    %v882 = vunpack.c.h.b16 %v737
    %v883 = vunpack.c.l.b16 %v738
    %v884 = vunpack.c.h.b16 %v738
    %v885 = vunpack.c.l.b16 %v739
    %v886 = vunpack.c.h.b16 %v739
    %v887 = vunpack.c.l.b16 %v740
    %v888 = vunpack.c.h.b16 %v740
    %v889 = vunpack.c.l.b16 %v741
    %v890 = vunpack.c.h.b16 %v741
    %v891 = vunpack.c.l.b16 %v742
    %v892 = vunpack.c.h.b16 %v742
    %v893 = vunpack.c.l.b16 %v743
    %v894 = vunpack.c.h.b16 %v743
    %v895 = vunpack.c.l.b16 %v744
    %v896 = vunpack.c.h.b16 %v744
    %v897 = vunpack.c.l.b16 %v745
    %v898 = vunpack.c.h.b16 %v745
    %v899 = vunpack.c.l.b16 %v746
    %v900 = vunpack.c.h.b16 %v746
    %v901 = vunpack.c.l.b16 %v747
    %v902 = vunpack.c.h.b16 %v747
    %v903 = vunpack.c.l.b16 %v748
    %v904 = vunpack.c.h.b16 %v748
    %v905 = vunpack.c.l.b16 %v749
    %v906 = vunpack.c.h.b16 %v749
    %v907 = vunpack.c.l.b16 %v750
    %v908 = vunpack.c.h.b16 %v750
    %v909 = vunpack.c.l.b16 %v751
    %v910 = vunpack.c.h.b16 %v751
    %v911 = vunpack.c.l.b16 %v752
    %v912 = vunpack.c.h.b16 %v752
    %v913 = vunpack.c.l.b16 %v753
    %v914 = vunpack.c.h.b16 %v753
    %v915 = vunpack.c.l.b16 %v754
    %v916 = vunpack.c.h.b16 %v754
    %v917 = vunpack.c.l.b16 %v755
    %v918 = vunpack.c.h.b16 %v755
    %v919 = vunpack.c.l.b16 %v756
    %v920 = vunpack.c.h.b16 %v756
    %v921 = vunpack.c.l.b16 %v757
    %v922 = vunpack.c.h.b16 %v757
    %v923 = vunpack.c.l.b16 %v758
    %v924 = vunpack.c.h.b16 %v758
    %v925 = vunpack.c.l.b16 %v759
    %v926 = vunpack.c.h.b16 %v759
    %v927 = vunpack.c.l.b16 %v760
    %v928 = vunpack.c.h.b16 %v760
    %v929 = vunpack.c.l.b16 %v761
    %v930 = vunpack.c.h.b16 %v761
    %v931 = vunpack.c.l.b16 %v762
    %v932 = vunpack.c.h.b16 %v762
    %v933 = vunpack.c.l.b16 %v763
    %v934 = vunpack.c.h.b16 %v763
    %v935 = vunpack.c.l.b16 %v764
    %v936 = vunpack.c.h.b16 %v764
    %v937 = vunpack.c.l.b16 %v765
    %v938 = vunpack.c.h.b16 %v765
    %v939 = vunpack.c.l.b16 %v766
    %v940 = vunpack.c.h.b16 %v766
    %v941 = vunpack.c.l.b16 %v767
    %v942 = vunpack.c.h.b16 %v767
    %v943 = vunpack.c.l.b16 %v768
    %v944 = vunpack.c.h.b16 %v768
    %v945 = vunpack.c.l.b16 %v769
    %v946 = vunpack.c.h.b16 %v769
    %v947 = vunpack.c.l.b16 %v770
    %v948 = vunpack.c.h.b16 %v770
    %v949 = vunpack.c.l.b16 %v771
    %v950 = vunpack.c.h.b16 %v771
    %v951 = vunpack.c.l.b16 %v772
    %v952 = vunpack.c.h.b16 %v772
    %v953 = vunpack.c.l.b16 %v773
    %v954 = vunpack.c.h.b16 %v773
    %v955 = vunpack.c.l.b16 %v774
    %v956 = vunpack.c.h.b16 %v774
    %v957 = vunpack.c.l.b16 %v775
    %v958 = vunpack.c.h.b16 %v775
    %v959 = vunpack.c.l.b16 %v776
    %v960 = vunpack.c.h.b16 %v776
    %v961 = vunpack.c.l.b16 %v777
    %v962 = vunpack.c.h.b16 %v777
    %v963 = vunpack.c.l.b16 %v778
    %v964 = vunpack.c.h.b16 %v778
    %v965 = vunpack.c.l.b16 %v779
    %v966 = vunpack.c.h.b16 %v779
    %v967 = vunpack.c.l.b16 %v780
    %v968 = vunpack.c.h.b16 %v780
    %v969 = vunpack.c.l.b16 %v781
    %v970 = vunpack.c.h.b16 %v781
    %v971 = vunpack.c.l.b16 %v782
    %v972 = vunpack.c.h.b16 %v782
    %v973 = vunpack.c.l.b16 %v783
    %v974 = vunpack.c.h.b16 %v783
    %v975 = vunpack.c.l.b16 %v784
    %v976 = vunpack.c.h.b16 %v784
    %v977 = vunpack.c.l.b16 %v785
    %v978 = vunpack.c.h.b16 %v785
    %v979 = vunpack.c.l.b16 %v786
    %v980 = vunpack.c.h.b16 %v786
    %v981 = vunpack.c.l.b16 %v787
    %v982 = vunpack.c.h.b16 %v787
    %v983 = vunpack.c.l.b16 %v788
    %v984 = vunpack.c.h.b16 %v788
    %v985 = vunpack.c.l.b16 %v789
    %v986 = vunpack.c.h.b16 %v789
    %v987 = vunpack.c.l.b16 %v790
    %v988 = vunpack.c.h.b16 %v790
    %v989 = vunpack.c.l.b16 %v791
    %v990 = vunpack.c.h.b16 %v791
    %v991 = vunpack.c.l.b16 %v792
    %v992 = vunpack.c.h.b16 %v792
    %v993 = vunpack.c.l.b16 %v793
    %v994 = vunpack.c.h.b16 %v793
    %v995 = vunpack.c.l.b16 %v794
    %v996 = vunpack.c.h.b16 %v794
    %v997 = vunpack.c.l.b16 %v795
    %v998 = vunpack.c.h.b16 %v795
    %v999 = vunpack.c.l.b16 %v796
    %v1000 = vunpack.c.h.b16 %v796
    %v1001 = vpack.c.b16 %v875, %v873
    %v1002 = vpack.c.b16 %v876, %v874
    %v1003 = vpack.c.b16 %v879, %v877
    %v1004 = vpack.c.b16 %v880, %v878
    %v1005 = vpack.c.b16 %v883, %v881
    %v1006 = vpack.c.b16 %v884, %v882
    %v1007 = vpack.c.b16 %v887, %v885
    %v1008 = vpack.c.b16 %v888, %v886
    %v1009 = vpack.c.b16 %v891, %v889
    %v1010 = vpack.c.b16 %v892, %v890
    %v1011 = vpack.c.b16 %v895, %v893
    %v1012 = vpack.c.b16 %v896, %v894
    %v1013 = vpack.c.b16 %v899, %v897
    %v1014 = vpack.c.b16 %v900, %v898
    %v1015 = vpack.c.b16 %v903, %v901
    %v1016 = vpack.c.b16 %v904, %v902
    %v1017 = vpack.c.b16 %v907, %v905
    %v1018 = vpack.c.b16 %v908, %v906
    %v1019 = vpack.c.b16 %v911, %v909
    %v1020 = vpack.c.b16 %v912, %v910
    %v1021 = vpack.c.b16 %v915, %v913
    %v1022 = vpack.c.b16 %v916, %v914
    %v1023 = vpack.c.b16 %v919, %v917
    %v1024 = vpack.c.b16 %v920, %v918
    %v1025 = vpack.c.b16 %v923, %v921
    %v1026 = vpack.c.b16 %v924, %v922
    %v1027 = vpack.c.b16 %v927, %v925
    %v1028 = vpack.c.b16 %v928, %v926
    %v1029 = vpack.c.b16 %v931, %v929
    %v1030 = vpack.c.b16 %v932, %v930
    %v1031 = vpack.c.b16 %v935, %v933
    %v1032 = vpack.c.b16 %v936, %v934
    %v1033 = vpack.c.b16 %v939, %v937
    %v1034 = vpack.c.b16 %v940, %v938
    %v1035 = vpack.c.b16 %v943, %v941
    %v1036 = vpack.c.b16 %v944, %v942
    %v1037 = vpack.c.b16 %v947, %v945
    %v1038 = vpack.c.b16 %v948, %v946
    %v1039 = vpack.c.b16 %v951, %v949
    %v1040 = vpack.c.b16 %v952, %v950
    %v1041 = vpack.c.b16 %v955, %v953
    %v1042 = vpack.c.b16 %v956, %v954
    %v1043 = vpack.c.b16 %v959, %v957
    %v1044 = vpack.c.b16 %v960, %v958
    %v1045 = vpack.c.b16 %v963, %v961
    %v1046 = vpack.c.b16 %v964, %v962
    %v1047 = vpack.c.b16 %v967, %v965
    %v1048 = vpack.c.b16 %v968, %v966
    %v1049 = vpack.c.b16 %v971, %v969
    %v1050 = vpack.c.b16 %v972, %v970
    %v1051 = vpack.c.b16 %v975, %v973
    %v1052 = vpack.c.b16 %v976, %v974
    %v1053 = vpack.c.b16 %v979, %v977
    %v1054 = vpack.c.b16 %v980, %v978
    %v1055 = vpack.c.b16 %v983, %v981
    %v1056 = vpack.c.b16 %v984, %v982
    %v1057 = vpack.c.b16 %v987, %v985
    %v1058 = vpack.c.b16 %v988, %v986
    %v1059 = vpack.c.b16 %v991, %v989
    %v1060 = vpack.c.b16 %v992, %v990
    %v1061 = vpack.c.b16 %v995, %v993
    %v1062 = vpack.c.b16 %v996, %v994
    %v1063 = vpack.c.b16 %v999, %v997
    %v1064 = vpack.c.b16 %v1000, %v998
    %1129 = vmatprep.subr.bf16.mxu0 %v1002
    %1130 = vmatpush1.bf16.msra.mxu0 %v1001
    %1131 = vmatprep.subr.bf16.mxu0 %v1004
    %1132 = vmatpush1.bf16.msra.mxu0 %v1003
    %1133 = vmatprep.subr.bf16.mxu0 %v1006
    %1134 = vmatpush1.bf16.msra.mxu0 %v1005
    %1135 = vmatprep.subr.bf16.mxu0 %v1008
    %1136 = vmatpush1.bf16.msra.mxu0 %v1007
    %1137 = vmatprep.subr.bf16.mxu0 %v1010
    %1138 = vmatpush1.bf16.msra.mxu0 %v1009
    %1139 = vmatprep.subr.bf16.mxu0 %v1012
    %1140 = vmatpush1.bf16.msra.mxu0 %v1011
    %1141 = vmatprep.subr.bf16.mxu0 %v1014
    %1142 = vmatpush1.bf16.msra.mxu0 %v1013
    %1143 = vmatprep.subr.bf16.mxu0 %v1016
    %1144 = vmatpush1.bf16.msra.mxu0 %v1015
    %1145 = vmatprep.subr.bf16.mxu0 %v1018
    %1146 = vmatpush1.bf16.msra.mxu0 %v1017
    %1147 = vmatprep.subr.bf16.mxu0 %v1020
    %1148 = vmatpush1.bf16.msra.mxu0 %v1019
    %1149 = vmatprep.subr.bf16.mxu0 %v1022
    %1150 = vmatpush1.bf16.msra.mxu0 %v1021
    %1151 = vmatprep.subr.bf16.mxu0 %v1024
    %1152 = vmatpush1.bf16.msra.mxu0 %v1023
    %1153 = vmatprep.subr.bf16.mxu0 %v1026
    %1154 = vmatpush1.bf16.msra.mxu0 %v1025
    %1155 = vmatprep.subr.bf16.mxu0 %v1028
    %1156 = vmatpush1.bf16.msra.mxu0 %v1027
    %1157 = vmatprep.subr.bf16.mxu0 %v1030
    %1158 = vmatpush1.bf16.msra.mxu0 %v1029
    %1159 = vmatprep.subr.bf16.mxu0 %v1032
    %1160 = vmatpush1.bf16.msra.mxu0 %v1031
    %1161 = vmatprep.mubr.bf16.mxu0 %v730
    %1162 = vmatmul.mubr.bf16.gmra.mrb[0].mxu0 %v729
    %v1163 = vpop.f32.mrb[0].mxu0
    %v1164 = vadd.f32 %v802, %v1163
    %v1165 = vpop.f32.mrb[0].mxu0
    %v1166 = vadd.f32 %v806, %v1165
    %v1167 = vpop.f32.mrb[0].mxu0
    %v1168 = vpop.f32.mrb[0].mxu0
    %1169 = vdwg.mxu0
    %1170 = vmatprep.subr.bf16.mxu0 %v1034
    %1171 = vmatpush1.bf16.msra.mxu0 %v1033
    %1172 = vmatprep.subr.bf16.mxu0 %v1036
    %1173 = vmatpush1.bf16.msra.mxu0 %v1035
    %1174 = vmatprep.subr.bf16.mxu0 %v1038
    %1175 = vmatpush1.bf16.msra.mxu0 %v1037
    %1176 = vmatprep.subr.bf16.mxu0 %v1040
    %1177 = vmatpush1.bf16.msra.mxu0 %v1039
    %1178 = vmatprep.subr.bf16.mxu0 %v1042
    %1179 = vmatpush1.bf16.msra.mxu0 %v1041
    %1180 = vmatprep.subr.bf16.mxu0 %v1044
    %1181 = vmatpush1.bf16.msra.mxu0 %v1043
    %1182 = vmatprep.subr.bf16.mxu0 %v1046
    %1183 = vmatpush1.bf16.msra.mxu0 %v1045
    %1184 = vmatprep.subr.bf16.mxu0 %v1048
    %1185 = vmatpush1.bf16.msra.mxu0 %v1047
    %1186 = vmatprep.subr.bf16.mxu0 %v1050
    %1187 = vmatpush1.bf16.msra.mxu0 %v1049
    %1188 = vmatprep.subr.bf16.mxu0 %v1052
    %1189 = vmatpush1.bf16.msra.mxu0 %v1051
    %1190 = vmatprep.subr.bf16.mxu0 %v1054
    %1191 = vmatpush1.bf16.msra.mxu0 %v1053
    %1192 = vmatprep.subr.bf16.mxu0 %v1056
    %1193 = vmatpush1.bf16.msra.mxu0 %v1055
    %1194 = vmatprep.subr.bf16.mxu0 %v1058
    %1195 = vmatpush1.bf16.msra.mxu0 %v1057
    %1196 = vmatprep.subr.bf16.mxu0 %v1060
    %1197 = vmatpush1.bf16.msra.mxu0 %v1059
    %1198 = vmatprep.subr.bf16.mxu0 %v1062
    %1199 = vmatpush1.bf16.msra.mxu0 %v1061
    %1200 = vmatprep.subr.bf16.mxu0 %v1064
    %1201 = vmatpush1.bf16.msra.mxu0 %v1063
    %1202 = vmatprep.mubr.bf16.mxu0 %v732
    %1203 = vmatmul.mubr.bf16.gmra.mrb[0].mxu0 %v731
    %v1204 = vpop.f32.mrb[0].mxu0
    %v1205 = vadd.f32 %v1164, %v1204
    %v1206 = vpop.f32.mrb[0].mxu0
    %v1207 = vadd.f32 %v1166, %v1206
    %v1208 = vpop.f32.mrb[0].mxu0
    %v1209 = vpop.f32.mrb[0].mxu0
    %1210 = vdwg.mxu0
    %v1211 = vtanh.pop %v1205
    %v1212 = vtanh.pop %v1207
    %1213 = vst [vmem:[#allocation2] sm:$0xff] %v1211
    %1214 = vst.msk [vmem:[#allocation2 + $0x8] sm:$0xff] %vm188, %v1212
    // Predicated region
    $region30: #{generator_forward.1} parent=1 // pred_check
      _
    $region31: #{generator_forward.1} parent=1 // pred_check_branch
      %1216 = sbr.rel (0) target = $region33
    $region32: #{generator_forward.1} parent=1 // pred_region
      %s1218 = ssub.s32 256, 256
      %1219 = vsyncadd [#allocation3], %s1218
      %s1221 = sshll.u32 [#allocation2], 4
      %s1222 = int_to_ptr.vmem [resolvable:$true] %s1221
      %1224 = dma.vmem_to_hbm [thread:$0]  %s1222, 256, %s7, [#allocation3]
    $region33: #{generator_forward.1} parent=1 // pred_fallthru
      _
    // Predicated region
    $region34: #{generator_forward.1} parent=1 // pred_check
      _
    $region35: #{generator_forward.1} parent=1 // pred_check_branch
      %1226 = sbr.rel (0) target = $region37
    $region36: #{generator_forward.1} parent=1 // pred_region
      %1227 = dma.done [#allocation3], 256
    $region37: #{generator_forward.1} parent=1 // pred_fallthru
      _
    %1228 = vsyncpa [#allocation3], 1

</llo_original>
